<compile_context>
chip_gen: v5e
topology: v5e:2x2
jax: 0.10.0
libtpu: 0.0.40
codegen_flags: <defaults>
</compile_context>

<pallas_src>
import math
import numpy as np
import jax
import jax.numpy as jnp
from jax.experimental import pallas as pl
from jax.experimental.pallas import tpu as pltpu

# ---- synthetic "config" (deterministic, defined in-script) -------------------
THRESHOLD = 0.5       # matching IoU threshold
ALPHA_F = 0.25        # focal loss alpha (gamma=2 realized as explicit squares)
REG_WEIGHT = 2.0      # config.reg_weights

LANE = 128
SUBLANE = 8


def _rcp(x):
    """1/x: EUP approximate reciprocal + one Newton step (~1 ulp, cheaper than fdiv)."""
    r = pl.reciprocal(x, approx=True)
    return r * (2.0 - x * r)


def _atan(x):
    """float32 arctan (any sign) via Cephes range reduction + degree-7 odd poly.

    TPU Pallas has no native arctan lowering; accurate to ~1e-7.
    """
    t3p8 = 2.414213562373095   # tan(3*pi/8)
    tp8 = 0.4142135623730951   # tan(pi/8)
    sgn = jnp.where(x < 0.0, -1.0, 1.0)
    xa = jnp.abs(x)
    big = xa > t3p8
    mid = (xa > tp8) & jnp.logical_not(big)
    y = jnp.where(big, math.pi / 2.0, jnp.where(mid, math.pi / 4.0, 0.0))
    inv_big = _rcp(jnp.where(big, xa, 1.0))
    mid_r = (xa - 1.0) * _rcp(xa + 1.0)
    xr = jnp.where(big, -inv_big, jnp.where(mid, mid_r, xa))
    z = xr * xr
    poly = ((((8.05374449538e-2 * z - 1.38776856032e-1) * z + 1.99777106478e-1) * z
             - 3.33329491539e-1) * z) * xr + xr
    return sgn * (y + poly)


# ---------------------------------------------------------------------------
# Pre-pass kernel: per-object best overlap + best (first) prior over ALL priors.
# Grid (B, T); T ("arbitrary") tiles over the prior axis with VMEM accumulators.
# ---------------------------------------------------------------------------
def _make_match_kernel(TS, O, S):
    SENT = float(S * LANE)   # > any valid flat prior index (exact in f32 for P < 2^24)

    def kernel(prior_ref, gtf_ref, out_ref, acc_ov, acc_pri):
        t = pl.program_id(1)
        nt = pl.num_programs(1)

        px0 = prior_ref[0]
        py0 = prior_ref[1]
        px1 = prior_ref[2]
        py1 = prior_ref[3]
        area_p = prior_ref[8]

        gx0 = gtf_ref[0, 0][:, None, :]                    # (O,1,LANE)
        gy0 = gtf_ref[0, 1][:, None, :]
        gx1 = gtf_ref[0, 2][:, None, :]
        gy1 = gtf_ref[0, 3][:, None, :]

        iw = jnp.maximum(jnp.minimum(gx1, px1[None]) - jnp.maximum(gx0, px0[None]), 0.0)
        ih = jnp.maximum(jnp.minimum(gy1, py1[None]) - jnp.maximum(gy0, py0[None]), 0.0)
        inter = iw * ih                                    # (O,TS,LANE)
        area_g = (gx1 - gx0) * (gy1 - gy0)
        union = area_g + area_p[None] - inter
        union = jnp.where(union > 0.0, union, 1.0)         # degenerate-box guard
        ov = inter * _rcp(union)

        sub_i = jax.lax.broadcasted_iota(jnp.int32, (TS, LANE), 0)
        lane_i = jax.lax.broadcasted_iota(jnp.int32, (TS, LANE), 1)
        flat_f = (t * (TS * LANE) + sub_i * LANE + lane_i).astype(jnp.float32)

        # per-lane max over this tile + first flat index achieving it
        lane_max = jnp.max(ov, axis=1)                                       # (O,LANE)
        lane_pri = jnp.min(jnp.where(ov == lane_max[:, None, :], flat_f[None], SENT),
                           axis=1)                                           # (O,LANE)

        @pl.when(t == 0)
        def _():
            acc_ov[...] = jnp.full((O, LANE), -1.0, jnp.float32)
            acc_pri[...] = jnp.full((O, LANE), SENT, jnp.float32)

        better = lane_max > acc_ov[...]          # strict >: earlier tile wins ties
        acc_pri[...] = jnp.where(better, lane_pri, acc_pri[...])
        acc_ov[...] = jnp.maximum(acc_ov[...], lane_max)

        @pl.when(t == nt - 1)
        def _():
            obj_max = jnp.max(acc_ov[...], axis=1, keepdims=True)            # (O,1)
            pri = jnp.min(jnp.where(acc_ov[...] == obj_max, acc_pri[...], SENT),
                          axis=1, keepdims=True)                             # (O,1)
            out_ref[0, 0] = jnp.broadcast_to(obj_max, (O, LANE))
            out_ref[0, 1] = jnp.broadcast_to(pri, (O, LANE))

    return kernel


# ---------------------------------------------------------------------------
# Main per-prior loss kernel. Grid (B, T), both "parallel"; one (TS,128) prior
# tile per step; emits (1, 3, 8, 128) partial sums [focal, ciou, n_pos].
# ---------------------------------------------------------------------------
def _make_loss_kernel(P_real, TS, O, C):

    def kernel(prior_ref, locs_ref, scores_ref, gtf_ref, gti_ref, out_ref):
        f32 = jnp.float32
        t = pl.program_id(1)

        px0 = prior_ref[0]
        py0 = prior_ref[1]
        px1 = prior_ref[2]
        py1 = prior_ref[3]
        pcx = prior_ref[4]
        pcy = prior_ref[5]
        pw = prior_ref[6]
        ph = prior_ref[7]
        area_p = prior_ref[8]

        sub_i = jax.lax.broadcasted_iota(jnp.int32, (TS, LANE), 0)
        lane_i = jax.lax.broadcasted_iota(jnp.int32, (TS, LANE), 1)
        flat_idx = t * (TS * LANE) + sub_i * LANE + lane_i
        valid = flat_idx < P_real                          # padded priors are ignored

        # lane-replicated GT rows, broadcast along sublanes only
        gx0 = gtf_ref[0, 0][:, None, :]                    # (O,1,LANE)
        gy0 = gtf_ref[0, 1][:, None, :]
        gx1 = gtf_ref[0, 2][:, None, :]
        gy1 = gtf_ref[0, 3][:, None, :]
        labs = gti_ref[0, 0][:, None, :]                   # int32
        rank = gti_ref[0, 1][:, None, :]
        pri = gti_ref[0, 2][:, None, :]
        keep = gti_ref[0, 3][:, None, :]

        # ---- Jaccard overlap of every GT box against every prior in the tile ---
        iw = jnp.maximum(jnp.minimum(gx1, px1[None]) - jnp.maximum(gx0, px0[None]), 0.0)
        ih = jnp.maximum(jnp.minimum(gy1, py1[None]) - jnp.maximum(gy0, py0[None]), 0.0)
        inter = iw * ih                                    # (O,TS,LANE)
        area_g = (gx1 - gx0) * (gy1 - gy0)
        union = area_g + area_p[None] - inter
        union = jnp.where(union > 0.0, union, 1.0)
        ov = inter * _rcp(union)

        best_ov = jnp.max(ov, axis=0)                      # (TS,LANE)
        o_iota = jax.lax.broadcasted_iota(jnp.int32, (O, TS, LANE), 0)
        best_obj = jnp.min(jnp.where(ov == best_ov[None], o_iota, O), axis=0)

        # ---- vectorized force-match (one pass; later kept object wins) ---------
        forced = (keep > 0) & (pri == flat_idx[None])      # (O,TS,LANE)
        win_rank = jnp.max(jnp.where(forced, rank, -1), axis=0)
        forced_any = win_rank >= 0
        best_ov = jnp.where(forced_any, 1.0, best_ov)
        best_obj = jnp.where(forced_any, win_rank, best_obj)

        # ---- gather per-prior label and GT box via one-hot over O --------------
        onehot = best_obj[None] == o_iota
        lab = jnp.sum(jnp.where(onehot, labs, 0), axis=0)  # (TS,LANE) int32
        tx0 = jnp.sum(jnp.where(onehot, gx0, 0.0), axis=0)
        ty0 = jnp.sum(jnp.where(onehot, gy0, 0.0), axis=0)
        tx1 = jnp.sum(jnp.where(onehot, gx1, 0.0), axis=0)
        ty1 = jnp.sum(jnp.where(onehot, gy1, 0.0), axis=0)

        lab = jnp.where(best_ov < THRESHOLD, -1, lab)
        lab = jnp.where(best_ov < THRESHOLD - 0.1, 0, lab)
        lab = jnp.where(valid, lab, -1)
        pos = lab > 0
        posf = pos.astype(f32)

        # ---- decode predicted offsets: gcxgcy -> cxcy -> xy ---------------------
        lt = locs_ref[0]                                   # (4,TS,LANE)
        cx = lt[0] * pw * 0.1 + pcx
        cy = lt[1] * ph * 0.1 + pcy
        w1 = jnp.exp(lt[2] * 0.2) * pw
        h1 = jnp.exp(lt[3] * 0.2) * ph
        dx0 = cx - 0.5 * w1
        dy0 = cy - 0.5 * h1
        dx1 = cx + 0.5 * w1
        dy1 = cy + 0.5 * h1

        # ---- CIoU regression loss (positives only; guarded denominators) -------
        # NOTE: guards clamp denominators to 1 where the reference would produce
        # NaN/Inf (degenerate boxes, iou==1 with v==0, padded priors).
        w2 = tx1 - tx0
        h2 = ty1 - ty0
        area1 = w1 * h1
        area2 = w2 * h2
        cx2 = 0.5 * (tx0 + tx1)
        cy2 = 0.5 * (ty0 + ty1)
        iw2 = jnp.maximum(jnp.minimum(dx1, tx1) - jnp.maximum(dx0, tx0), 0.0)
        ih2 = jnp.maximum(jnp.minimum(dy1, ty1) - jnp.maximum(dy0, ty0), 0.0)
        inter_a = iw2 * ih2
        ow = jnp.maximum(jnp.maximum(dx1, tx1) - jnp.minimum(dx0, tx0), 0.0)
        oh = jnp.maximum(jnp.maximum(dy1, ty1) - jnp.minimum(dy0, ty0), 0.0)
        outer_diag = ow * ow + oh * oh
        inter_diag = (cx2 - cx) * (cx2 - cx) + (cy2 - cy) * (cy2 - cy)
        union_c = area1 + area2 - inter_a
        union_s = jnp.where(pos & (union_c > 0.0), union_c, 1.0)
        outer_s = jnp.where(pos & (outer_diag > 0.0), outer_diag, 1.0)
        iou = inter_a * _rcp(union_s)
        u = inter_diag * _rcp(outer_s)
        # atan(w2/h2) - atan(w1/h1) == atan((w2*h1 - w1*h2) / (h1*h2 + w1*w2))
        at_num = w2 * h1 - w1 * h2
        at_den = h1 * h2 + w1 * w2
        at_den = jnp.where(pos & (at_den > 0.0), at_den, 1.0)
        dat = _atan(at_num * _rcp(at_den))
        v = (4.0 / (math.pi ** 2)) * dat * dat
        denom_a = 1.0 - iou + v
        denom_a = jnp.where(denom_a > 0.0, denom_a, 1.0)
        alpha = v * _rcp(denom_a)
        cious = jnp.clip(iou - (u + alpha * v), -1.0, 1.0)
        ciou_terms = posf * (1.0 - cious)                  # (TS,LANE)

        # ---- sigmoid focal loss (gamma=2, alpha=0.25), select-based ------------
        # fl = coef * sigmoid(z)^2 * softplus(z), z = -x for the target class else x.
        # TODO(synk): chunk the class axis (lax.fori_loop over pl.ds slices of
        # scores_ref) when C is large (>~16) to bound live (C,TS,128) temporaries.
        x = scores_ref[0]                                  # (C,TS,LANE)
        cls_id = jax.lax.broadcasted_iota(jnp.int32, (C, TS, LANE), 0) + 1
        lab3 = lab[None]
        is_pos = lab3 == cls_id
        coef = jnp.where(is_pos, ALPHA_F, jnp.where(lab3 >= 0, 1.0 - ALPHA_F, 0.0))
        z = jnp.where(is_pos, -x, x)
        ax = jnp.abs(x)                                    # |z| == |x|
        e = jnp.exp(-ax)
        le = jnp.log(1.0 + e)
        r = _rcp(1.0 + e)
        q = jnp.where(z >= 0.0, r, e * r)                  # sigmoid(z)
        sp = jnp.maximum(z, 0.0) + le                      # softplus(z)
        fl = coef * (q * q) * sp
        fl2 = jnp.sum(fl, axis=0)                          # (TS,LANE)

        # ---- lane-dense (3, 8, 128) partial sums for this (b, t) ----------------
        def fold8(a):                                      # (TS,128) -> (8,128)
            return jnp.sum(a.reshape(TS // SUBLANE, SUBLANE, LANE), axis=0)

        out_ref[0, 0] = fold8(fl2)
        out_ref[0, 1] = fold8(ciou_terms)
        out_ref[0, 2] = fold8(posf)

    return kernel


def _choose_tiling(P, O, C):
    """Pick the prior-tile height TS (sublanes) so the largest (max(O,C,8),TS,128)
    f32 intermediate stays ~<= 4 MiB (bounds VMEM / live ranges on v7x)."""
    s_min = -(-P // (SUBLANE * LANE)) * SUBLANE            # minimal padded sublanes
    row = max(O, C, SUBLANE)
    ts_cap = max(SUBLANE, ((4 << 20) // (row * LANE * 4)) // SUBLANE * SUBLANE)
    TS = min(512, ts_cap, s_min)
    Ppad = -(-P // (TS * LANE)) * (TS * LANE)
    S = Ppad // LANE
    T = S // TS
    return TS, Ppad, S, T


def _compiler_params(block_bytes, semantics):
    # ~2x for double-buffered inputs + headroom for compiler scratch / spills.
    vmem = min(max(3 * block_bytes + (8 << 20), 32 << 20), 48 << 20)
    return pltpu.CompilerParams(dimension_semantics=semantics,
                                vmem_limit_bytes=vmem)


def netnet_detector_loss(odm_locs, odm_scores, boxes, labels, priors_cxcy,
                         reg_weight=REG_WEIGHT):
    """odm_locs (B,P,4), odm_scores (B,P,C), boxes (B,O,4) xy, labels (B,O)."""
    B, P, _ = odm_locs.shape
    C = odm_scores.shape[2]
    O = boxes.shape[1]
    assert P == odm_scores.shape[1] == priors_cxcy.shape[0]

    TS, Ppad, S, T = _choose_tiling(P, O, C)

    # ---- grid-invariant prior features: corners + cxcy + wh + area -------------
    priors_cxcy = priors_cxcy.astype(jnp.float32)
    pxy = jnp.concatenate([priors_cxcy[:, :2] - priors_cxcy[:, 2:] / 2.0,
                           priors_cxcy[:, :2] + priors_cxcy[:, 2:] / 2.0], axis=1)
    area = ((pxy[:, 2] - pxy[:, 0]) * (pxy[:, 3] - pxy[:, 1]))[:, None]
    prior_feat = jnp.concatenate([pxy, priors_cxcy, area], axis=1)       # (P, 9)
    if Ppad > P:
        pad_row = jnp.array([0, 0, 0, 0, 0, 0, 1, 1, 0], jnp.float32)    # w=h=1: finite decode
        prior_feat = jnp.concatenate(
            [prior_feat, jnp.broadcast_to(pad_row, (Ppad - P, 9))], axis=0)
    prior_all = prior_feat.T.reshape(9, S, LANE)                         # (9,S,128)

    # ---- predictions, padded and re-tiled to (B, K, S, 128) --------------------
    # TODO(synk): accept prior-major (B,4,P)/(B,C,P) inputs upstream (or fuse the
    # transpose into the input DMA) to avoid this HBM round-trip at production scale.
    locs = odm_locs.astype(jnp.float32)
    scores = odm_scores.astype(jnp.float32)
    if Ppad > P:
        locs = jnp.pad(locs, ((0, 0), (0, Ppad - P), (0, 0)))
        scores = jnp.pad(scores, ((0, 0), (0, Ppad - P), (0, 0)))
    locs_t = jnp.transpose(locs, (0, 2, 1)).reshape(B, 4, S, LANE)
    scores_t = jnp.transpose(scores, (0, 2, 1)).reshape(B, C, S, LANE)

    # ---- GT boxes, lane-dense (B, 4, O, 128) ------------------------------------
    gtf = jnp.broadcast_to(
        jnp.transpose(boxes.astype(jnp.float32), (0, 2, 1))[..., None],
        (B, 4, O, LANE))

    # ---- pre-pass: per-object global best overlap / best prior ------------------
    # TODO(synk): chunk the O axis inside both kernels for very large object counts.
    match_kernel = _make_match_kernel(TS, O, S)
    match_blk = (9 * TS + 6 * SUBLANE) * LANE * 4
    match = pl.pallas_call(
        match_kernel,
        out_shape=jax.ShapeDtypeStruct((B, 2, O, LANE), jnp.float32),
        grid_spec=pltpu.PrefetchScalarGridSpec(
            num_scalar_prefetch=0,
            grid=(B, T),
            in_specs=[
                pl.BlockSpec((9, TS, LANE), lambda b, t: (0, t, 0)),       # priors
                pl.BlockSpec((1, 4, O, LANE), lambda b, t: (b, 0, 0, 0)),  # gt boxes
            ],
            out_specs=pl.BlockSpec((1, 2, O, LANE), lambda b, t: (b, 0, 0, 0)),
            scratch_shapes=[pltpu.VMEM((O, LANE), jnp.float32),
                            pltpu.VMEM((O, LANE), jnp.float32)],
        ),
        compiler_params=_compiler_params(match_blk, ("parallel", "arbitrary")),
    )(prior_all, gtf)

    # ---- force-match metadata: keep / exclusive rank per kept object ------------
    ov_obj = match[:, 0, :, 0]                        # (B,O)
    pri_obj = match[:, 1, :, 0]                       # (B,O) float flat index (exact)
    keep_i = (ov_obj > 0.0).astype(jnp.int32)
    rank = jnp.cumsum(keep_i, axis=1) - keep_i        # rank among previously kept
    gti = jnp.stack([labels.astype(jnp.int32), rank,
                     pri_obj.astype(jnp.int32), keep_i], axis=1)           # (B,4,O)
    gti = jnp.broadcast_to(gti[..., None], (B, 4, O, LANE))

    # ---- main loss kernel over (B, T) prior tiles --------------------------------
    loss_kernel = _make_loss_kernel(P, TS, O, C)
    loss_blk = ((9 + 4 + C) * TS + 8 * SUBLANE + 3 * SUBLANE) * LANE * 4
    parts = pl.pallas_call(
        loss_kernel,
        out_shape=jax.ShapeDtypeStruct((B * T, 3, SUBLANE, LANE), jnp.float32),
        grid_spec=pltpu.PrefetchScalarGridSpec(
            num_scalar_prefetch=0,
            grid=(B, T),
            in_specs=[
                pl.BlockSpec((9, TS, LANE), lambda b, t: (0, t, 0)),          # priors
                pl.BlockSpec((1, 4, TS, LANE), lambda b, t: (b, 0, t, 0)),    # locs
                pl.BlockSpec((1, C, TS, LANE), lambda b, t: (b, 0, t, 0)),    # scores
                pl.BlockSpec((1, 4, O, LANE), lambda b, t: (b, 0, 0, 0)),     # gt boxes
                pl.BlockSpec((1, 4, O, LANE), lambda b, t: (b, 0, 0, 0)),     # match meta
            ],
            out_specs=pl.BlockSpec((1, 3, SUBLANE, LANE),
                                   lambda b, t: (b * T + t, 0, 0, 0)),
        ),
        compiler_params=_compiler_params(loss_blk, ("parallel", "parallel")),
    )(prior_all, locs_t, scores_t, gtf, gti)

    sums = jnp.sum(parts, axis=(0, 2, 3))             # (3,): focal, ciou, n_pos
    focal_total, ciou_total, npos = sums[0], sums[1], sums[2]
    denom = jnp.where(npos > 0.0, npos, 1.0)          # guard n_pos == 0
    conf_loss = focal_total / denom                   # SigmoidFocalLoss(sum)/n_pos
    loc_loss = ciou_total / denom                     # IouLoss(Ciou, reduce='mean')
    return conf_loss + reg_weight * loc_loss


# ---------------- pure numpy reference (mirrors the PyTorch forward) ----------
def reference_loss(odm_locs, odm_scores, boxes, labels, priors_cxcy,
                   threshold=THRESHOLD, reg_weight=REG_WEIGHT):
    odm_locs = np.asarray(odm_locs, np.float64)
    odm_scores = np.asarray(odm_scores, np.float64)
    boxes = np.asarray(boxes, np.float64)
    labels = np.asarray(labels, np.int64)
    priors_cxcy = np.asarray(priors_cxcy, np.float64)
    priors_xy = np.concatenate([priors_cxcy[:, :2] - priors_cxcy[:, 2:] / 2,
                                priors_cxcy[:, :2] + priors_cxcy[:, 2:] / 2], axis=1)
    B, P, _ = odm_locs.shape
    C = odm_scores.shape[2]
    focal_total, ciou_total, n_pos_total = 0.0, 0.0, 0.0
    for i in range(B):
        b = boxes[i]
        O = b.shape[0]
        il = np.maximum(b[:, None, 0], priors_xy[None, :, 0])
        it = np.maximum(b[:, None, 1], priors_xy[None, :, 1])
        ir = np.minimum(b[:, None, 2], priors_xy[None, :, 2])
        ib = np.minimum(b[:, None, 3], priors_xy[None, :, 3])
        inter = np.clip(ir - il, 0, None) * np.clip(ib - it, 0, None)
        area_b = ((b[:, 2] - b[:, 0]) * (b[:, 3] - b[:, 1]))[:, None]
        area_p = ((priors_xy[:, 2] - priors_xy[:, 0]) *
                  (priors_xy[:, 3] - priors_xy[:, 1]))[None, :]
        overlap = inter / (area_b + area_p - inter)
        ov_prior = overlap.max(axis=0)
        obj_prior = overlap.argmax(axis=0)
        ov_obj = overlap.max(axis=1)
        pri_obj = overlap.argmax(axis=1)
        rank = 0
        for o in range(O):
            if ov_obj[o] > 0:
                ov_prior[pri_obj[o]] = 1.0
                obj_prior[pri_obj[o]] = rank
                rank += 1
        lab = labels[i][obj_prior].copy()
        lab[ov_prior < threshold] = -1
        lab[ov_prior < threshold - 0.1] = 0
        tl = boxes[i][obj_prior]
        g = odm_locs[i]
        cx = g[:, 0] * priors_cxcy[:, 2] / 10 + priors_cxcy[:, 0]
        cy = g[:, 1] * priors_cxcy[:, 3] / 10 + priors_cxcy[:, 1]
        w1 = np.exp(g[:, 2] / 5) * priors_cxcy[:, 2]
        h1 = np.exp(g[:, 3] / 5) * priors_cxcy[:, 3]
        d = np.stack([cx - w1 / 2, cy - h1 / 2, cx + w1 / 2, cy + h1 / 2], axis=1)
        pos = lab > 0
        dp, tp = d[pos], tl[pos]
        w1p, h1p = dp[:, 2] - dp[:, 0], dp[:, 3] - dp[:, 1]
        w2p, h2p = tp[:, 2] - tp[:, 0], tp[:, 3] - tp[:, 1]
        a1, a2 = w1p * h1p, w2p * h2p
        c1x, c1y = (dp[:, 0] + dp[:, 2]) / 2, (dp[:, 1] + dp[:, 3]) / 2
        c2x, c2y = (tp[:, 0] + tp[:, 2]) / 2, (tp[:, 1] + tp[:, 3]) / 2
        iw = np.clip(np.minimum(dp[:, 2], tp[:, 2]) - np.maximum(dp[:, 0], tp[:, 0]), 0, None)
        ih = np.clip(np.minimum(dp[:, 3], tp[:, 3]) - np.maximum(dp[:, 1], tp[:, 1]), 0, None)
        inter_a = iw * ih
        ow = np.clip(np.maximum(dp[:, 2], tp[:, 2]) - np.minimum(dp[:, 0], tp[:, 0]), 0, None)
        oh = np.clip(np.maximum(dp[:, 3], tp[:, 3]) - np.minimum(dp[:, 1], tp[:, 1]), 0, None)
        iou = inter_a / (a1 + a2 - inter_a)
        u = ((c2x - c1x) ** 2 + (c2y - c1y) ** 2) / (ow ** 2 + oh ** 2)
        v = (4 / math.pi ** 2) * (np.arctan(w2p / h2p) - np.arctan(w1p / h1p)) ** 2
        alpha = v / (1 - iou + v)
        cious = np.clip(iou - (u + alpha * v), -1.0, 1.0)
        ciou_total += np.sum(1.0 - cious)
        n_pos_total += float(pos.sum())
        logits = odm_scores[i]
        p = 1.0 / (1.0 + np.exp(-logits))
        cls = np.arange(1, C + 1)[None, :]
        t = lab[:, None]
        term1 = (1 - p) ** 2 * np.log(p)
        term2 = p ** 2 * np.log(1 - p)
        pos_mask = (t == cls).astype(np.float64)
        neg_mask = ((t != cls) & (t >= 0)).astype(np.float64)
        fl = -pos_mask * term1 * ALPHA_F - neg_mask * term2 * (1 - ALPHA_F)
        focal_total += fl.sum()
    return focal_total / n_pos_total + reg_weight * (ciou_total / n_pos_total)


if __name__ == "__main__":
    key = jax.random.PRNGKey(0)
    B, O, C = 2, 3, 4           # batch, gt objects per image, foreground classes
    G = 16
    P = G * G                   # 256 priors on a 16x16 grid (padded to 1024 inside)

    ys, xs = jnp.meshgrid(jnp.arange(G), jnp.arange(G), indexing="ij")
    pcx = (xs.reshape(-1).astype(jnp.float32) + 0.5) / G
    pcy = (ys.reshape(-1).astype(jnp.float32) + 0.5) / G
    pwh = jnp.full((P,), 0.15, jnp.float32)
    priors_cxcy = jnp.stack([pcx, pcy, pwh, pwh], axis=1)

    k1, k2, k3, k4, k5 = jax.random.split(key, 5)
    odm_locs = 0.5 * jax.random.normal(k1, (B, P, 4), jnp.float32)
    odm_scores = jax.random.normal(k2, (B, P, C), jnp.float32)
    centers = jax.random.uniform(k3, (B, O, 2), minval=0.25, maxval=0.75)
    halves = jax.random.uniform(k4, (B, O, 2), minval=0.06, maxval=0.2)
    boxes = jnp.concatenate([centers - halves, centers + halves], axis=2).astype(jnp.float32)
    labels = jax.random.randint(k5, (B, O), 1, C + 1).astype(jnp.int32)

    loss = netnet_detector_loss(odm_locs, odm_scores, boxes, labels, priors_cxcy)
    loss = jax.block_until_ready(loss)

    ref = reference_loss(odm_locs, odm_scores, boxes, labels, priors_cxcy)
    assert np.isfinite(float(loss)), "loss is not finite"
    np.testing.assert_allclose(float(loss), float(ref), rtol=2e-3, atol=2e-3)
    print("KERNEL_OK")
</pallas_src>

<mosaic_0001>
module attributes {stable_mosaic.version = 11 : i64} {
  func.func @kernel(%arg0: i32, %arg1: i32, %arg2: memref<9x8x128xf32, #tpu.memory_space<vmem>>, %arg3: memref<1x4x3x128xf32, #tpu.memory_space<vmem>>, %arg4: memref<1x2x3x128xf32, #tpu.memory_space<vmem>>, %arg5: memref<3x128xf32, #tpu.memory_space<vmem>>, %arg6: memref<3x128xf32, #tpu.memory_space<vmem>>) attributes {dimension_semantics = [#tpu.dimension_semantics<parallel>, #tpu.dimension_semantics<arbitrary>], iteration_bounds = array<i64: 2, 1>, scalar_prefetch = 0 : i64, scratch_operands = 2 : i64, tpu.core_type = #tpu.core_type<tc>, window_params = [{transform_indices = @transform_0, window_bounds = array<i64: 9, 8, 128>}, {transform_indices = @transform_1, window_bounds = array<i64: 1, 4, 3, 128>}, {transform_indices = @transform_2, window_bounds = array<i64: 1, 2, 3, 128>}]} {
    %c0 = arith.constant 0 : index
    %c0_0 = arith.constant 0 : index
    %c0_1 = arith.constant 0 : index
    %0 = vector.load %arg2[%c0, %c0_0, %c0_1] : memref<9x8x128xf32, #tpu.memory_space<vmem>>, vector<1x8x128xf32>
    %1 = vector.shape_cast %0 : vector<1x8x128xf32> to vector<8x128xf32>
    %c1 = arith.constant 1 : index
    %c0_2 = arith.constant 0 : index
    %c0_3 = arith.constant 0 : index
    %2 = vector.load %arg2[%c1, %c0_2, %c0_3] : memref<9x8x128xf32, #tpu.memory_space<vmem>>, vector<1x8x128xf32>
    %3 = vector.shape_cast %2 : vector<1x8x128xf32> to vector<8x128xf32>
    %c2 = arith.constant 2 : index
    %c0_4 = arith.constant 0 : index
    %c0_5 = arith.constant 0 : index
    %4 = vector.load %arg2[%c2, %c0_4, %c0_5] : memref<9x8x128xf32, #tpu.memory_space<vmem>>, vector<1x8x128xf32>
    %5 = vector.shape_cast %4 : vector<1x8x128xf32> to vector<8x128xf32>
    %c3 = arith.constant 3 : index
    %c0_6 = arith.constant 0 : index
    %c0_7 = arith.constant 0 : index
    %6 = vector.load %arg2[%c3, %c0_6, %c0_7] : memref<9x8x128xf32, #tpu.memory_space<vmem>>, vector<1x8x128xf32>
    %7 = vector.shape_cast %6 : vector<1x8x128xf32> to vector<8x128xf32>
    %c8 = arith.constant 8 : index
    %c0_8 = arith.constant 0 : index
    %c0_9 = arith.constant 0 : index
    %8 = vector.load %arg2[%c8, %c0_8, %c0_9] : memref<9x8x128xf32, #tpu.memory_space<vmem>>, vector<1x8x128xf32>
    %9 = vector.shape_cast %8 : vector<1x8x128xf32> to vector<8x128xf32>
    %c0_10 = arith.constant 0 : index
    %c0_11 = arith.constant 0 : index
    %c0_12 = arith.constant 0 : index
    %c0_13 = arith.constant 0 : index
    %10 = vector.load %arg3[%c0_10, %c0_11, %c0_12, %c0_13] : memref<1x4x3x128xf32, #tpu.memory_space<vmem>>, vector<1x1x3x128xf32>
    %11 = vector.shape_cast %10 : vector<1x1x3x128xf32> to vector<3x128xf32>
    %12 = vector.shape_cast %11 : vector<3x128xf32> to vector<3x1x128xf32>
    %c0_14 = arith.constant 0 : index
    %c1_15 = arith.constant 1 : index
    %c0_16 = arith.constant 0 : index
    %c0_17 = arith.constant 0 : index
    %13 = vector.load %arg3[%c0_14, %c1_15, %c0_16, %c0_17] : memref<1x4x3x128xf32, #tpu.memory_space<vmem>>, vector<1x1x3x128xf32>
    %14 = vector.shape_cast %13 : vector<1x1x3x128xf32> to vector<3x128xf32>
    %15 = vector.shape_cast %14 : vector<3x128xf32> to vector<3x1x128xf32>
    %c0_18 = arith.constant 0 : index
    %c2_19 = arith.constant 2 : index
    %c0_20 = arith.constant 0 : index
    %c0_21 = arith.constant 0 : index
    %16 = vector.load %arg3[%c0_18, %c2_19, %c0_20, %c0_21] : memref<1x4x3x128xf32, #tpu.memory_space<vmem>>, vector<1x1x3x128xf32>
    %17 = vector.shape_cast %16 : vector<1x1x3x128xf32> to vector<3x128xf32>
    %18 = vector.shape_cast %17 : vector<3x128xf32> to vector<3x1x128xf32>
    %c0_22 = arith.constant 0 : index
    %c3_23 = arith.constant 3 : index
    %c0_24 = arith.constant 0 : index
    %c0_25 = arith.constant 0 : index
    %19 = vector.load %arg3[%c0_22, %c3_23, %c0_24, %c0_25] : memref<1x4x3x128xf32, #tpu.memory_space<vmem>>, vector<1x1x3x128xf32>
    %20 = vector.shape_cast %19 : vector<1x1x3x128xf32> to vector<3x128xf32>
    %21 = vector.shape_cast %20 : vector<3x128xf32> to vector<3x1x128xf32>
    %22 = vector.shape_cast %5 : vector<8x128xf32> to vector<1x8x128xf32>
    %23 = vector.broadcast %18 : vector<3x1x128xf32> to vector<3x8x128xf32>
    %24 = vector.broadcast %22 : vector<1x8x128xf32> to vector<3x8x128xf32>
    %25 = arith.minimumf %23, %24 : vector<3x8x128xf32>
    %26 = vector.shape_cast %1 : vector<8x128xf32> to vector<1x8x128xf32>
    %27 = vector.broadcast %12 : vector<3x1x128xf32> to vector<3x8x128xf32>
    %28 = vector.broadcast %26 : vector<1x8x128xf32> to vector<3x8x128xf32>
    %29 = arith.maximumf %27, %28 : vector<3x8x128xf32>
    %30 = arith.subf %25, %29 : vector<3x8x128xf32>
    %cst = arith.constant 0.000000e+00 : f32
    %31 = vector.broadcast %cst : f32 to vector<3x8x128xf32>
    %32 = arith.maximumf %30, %31 : vector<3x8x128xf32>
    %33 = vector.shape_cast %7 : vector<8x128xf32> to vector<1x8x128xf32>
    %34 = vector.broadcast %21 : vector<3x1x128xf32> to vector<3x8x128xf32>
    %35 = vector.broadcast %33 : vector<1x8x128xf32> to vector<3x8x128xf32>
    %36 = arith.minimumf %34, %35 : vector<3x8x128xf32>
    %37 = vector.shape_cast %3 : vector<8x128xf32> to vector<1x8x128xf32>
    %38 = vector.broadcast %15 : vector<3x1x128xf32> to vector<3x8x128xf32>
    %39 = vector.broadcast %37 : vector<1x8x128xf32> to vector<3x8x128xf32>
    %40 = arith.maximumf %38, %39 : vector<3x8x128xf32>
    %41 = arith.subf %36, %40 : vector<3x8x128xf32>
    %cst_26 = arith.constant 0.000000e+00 : f32
    %42 = vector.broadcast %cst_26 : f32 to vector<3x8x128xf32>
    %43 = arith.maximumf %41, %42 : vector<3x8x128xf32>
    %44 = arith.mulf %32, %43 : vector<3x8x128xf32>
    %45 = arith.subf %18, %12 : vector<3x1x128xf32>
    %46 = arith.subf %21, %15 : vector<3x1x128xf32>
    %47 = arith.mulf %45, %46 : vector<3x1x128xf32>
    %48 = vector.shape_cast %9 : vector<8x128xf32> to vector<1x8x128xf32>
    %49 = vector.broadcast %47 : vector<3x1x128xf32> to vector<3x8x128xf32>
    %50 = vector.broadcast %48 : vector<1x8x128xf32> to vector<3x8x128xf32>
    %51 = arith.addf %49, %50 : vector<3x8x128xf32>
    %52 = arith.subf %51, %44 : vector<3x8x128xf32>
    %cst_27 = arith.constant 0.000000e+00 : f32
    %53 = vector.broadcast %cst_27 : f32 to vector<3x8x128xf32>
    %54 = arith.cmpf ogt, %52, %53 : vector<3x8x128xf32>
    %cst_28 = arith.constant 1.000000e+00 : f32
    %55 = vector.broadcast %cst_28 : f32 to vector<3x8x128xf32>
    %56 = arith.select %54, %52, %55 : vector<3x8x128xi1>, vector<3x8x128xf32>
    %57 = tpu.reciprocal %56 {approx = true} : vector<3x8x128xf32> -> vector<3x8x128xf32>
    %58 = arith.mulf %56, %57 : vector<3x8x128xf32>
    %cst_29 = arith.constant 2.000000e+00 : f32
    %59 = vector.broadcast %cst_29 : f32 to vector<3x8x128xf32>
    %60 = arith.subf %59, %58 : vector<3x8x128xf32>
    %61 = arith.mulf %57, %60 : vector<3x8x128xf32>
    %62 = arith.mulf %44, %61 : vector<3x8x128xf32>
    %63 = tpu.iota {dimensions = array<i32: 0>} : vector<8x128xi32>
    %64 = tpu.iota {dimensions = array<i32: 1>} : vector<8x128xi32>
    %c1024_i32 = arith.constant 1024 : i32
    %65 = arith.muli %arg1, %c1024_i32 : i32
    %c128_i32 = arith.constant 128 : i32
    %66 = vector.broadcast %c128_i32 : i32 to vector<8x128xi32>
    %67 = arith.muli %63, %66 : vector<8x128xi32>
    %68 = vector.broadcast %65 : i32 to vector<8x128xi32>
    %69 = arith.addi %68, %67 : vector<8x128xi32>
    %70 = arith.addi %69, %64 : vector<8x128xi32>
    %71 = arith.sitofp %70 : vector<8x128xi32> to vector<8x128xf32>
    %cst_30 = arith.constant dense<0xFF800000> : vector<3x128xf32>
    %72 = vector.multi_reduction <maximumf>, %62, %cst_30 [1] : vector<3x8x128xf32> to vector<3x128xf32>
    %73 = vector.shape_cast %72 : vector<3x128xf32> to vector<3x1x128xf32>
    %74 = vector.broadcast %73 : vector<3x1x128xf32> to vector<3x8x128xf32>
    %75 = arith.cmpf oeq, %62, %74 : vector<3x8x128xf32>
    %76 = vector.shape_cast %71 : vector<8x128xf32> to vector<1x8x128xf32>
    %cst_31 = arith.constant 1.024000e+03 : f32
    %77 = vector.shape_cast %76 : vector<1x8x128xf32> to vector<1x8x128xf32>
    %78 = vector.broadcast %77 : vector<1x8x128xf32> to vector<3x8x128xf32>
    %79 = vector.broadcast %cst_31 : f32 to vector<3x8x128xf32>
    %80 = arith.select %75, %78, %79 : vector<3x8x128xi1>, vector<3x8x128xf32>
    %cst_32 = arith.constant dense<0x7F800000> : vector<3x128xf32>
    %81 = vector.multi_reduction <minimumf>, %80, %cst_32 [1] : vector<3x8x128xf32> to vector<3x128xf32>
    %c0_i32 = arith.constant 0 : i32
    %82 = arith.cmpi eq, %arg1, %c0_i32 : i32
    %83 = arith.extui %82 : i1 to i32
    %c0_i32_33 = arith.constant 0 : i32
    %84 = arith.cmpi ne, %83, %c0_i32_33 : i32
    scf.if %84 {
      %cst_46 = arith.constant -1.000000e+00 : f32
      %96 = vector.broadcast %cst_46 : f32 to vector<3x128xf32>
      %c0_47 = arith.constant 0 : index
      %c0_48 = arith.constant 0 : index
      %97 = vector.load %arg5[%c0_47, %c0_48] : memref<3x128xf32, #tpu.memory_space<vmem>>, vector<3x128xf32>
      tpu.vector_store %arg5[%c0_47, %c0_48], %96 {strides = array<i32>} : memref<3x128xf32, #tpu.memory_space<vmem>>, vector<3x128xf32>,
      %cst_49 = arith.constant 1.024000e+03 : f32
      %98 = vector.broadcast %cst_49 : f32 to vector<3x128xf32>
      %c0_50 = arith.constant 0 : index
      %c0_51 = arith.constant 0 : index
      %99 = vector.load %arg6[%c0_50, %c0_51] : memref<3x128xf32, #tpu.memory_space<vmem>>, vector<3x128xf32>
      tpu.vector_store %arg6[%c0_50, %c0_51], %98 {strides = array<i32>} : memref<3x128xf32, #tpu.memory_space<vmem>>, vector<3x128xf32>,
    } else {
    }
    %c0_34 = arith.constant 0 : index
    %c0_35 = arith.constant 0 : index
    %85 = vector.load %arg5[%c0_34, %c0_35] : memref<3x128xf32, #tpu.memory_space<vmem>>, vector<3x128xf32>
    %86 = arith.cmpf ogt, %72, %85 : vector<3x128xf32>
    %c0_36 = arith.constant 0 : index
    %c0_37 = arith.constant 0 : index
    %87 = vector.load %arg6[%c0_36, %c0_37] : memref<3x128xf32, #tpu.memory_space<vmem>>, vector<3x128xf32>
    %88 = arith.select %86, %81, %87 : vector<3x128xi1>, vector<3x128xf32>
    %c0_38 = arith.constant 0 : index
    %c0_39 = arith.constant 0 : index
    %89 = vector.load %arg6[%c0_38, %c0_39] : memref<3x128xf32, #tpu.memory_space<vmem>>, vector<3x128xf32>
    tpu.vector_store %arg6[%c0_38, %c0_39], %88 {strides = array<i32>} : memref<3x128xf32, #tpu.memory_space<vmem>>, vector<3x128xf32>,
    %c0_40 = arith.constant 0 : index
    %c0_41 = arith.constant 0 : index
    %90 = vector.load %arg5[%c0_40, %c0_41] : memref<3x128xf32, #tpu.memory_space<vmem>>, vector<3x128xf32>
    %91 = arith.maximumf %90, %72 : vector<3x128xf32>
    %c0_42 = arith.constant 0 : index
    %c0_43 = arith.constant 0 : index
    %92 = vector.load %arg5[%c0_42, %c0_43] : memref<3x128xf32, #tpu.memory_space<vmem>>, vector<3x128xf32>
    tpu.vector_store %arg5[%c0_42, %c0_43], %91 {strides = array<i32>} : memref<3x128xf32, #tpu.memory_space<vmem>>, vector<3x128xf32>,
    %c0_i32_44 = arith.constant 0 : i32
    %93 = arith.cmpi eq, %arg1, %c0_i32_44 : i32
    %94 = arith.extui %93 : i1 to i32
    %c0_i32_45 = arith.constant 0 : i32
    %95 = arith.cmpi ne, %94, %c0_i32_45 : i32
    scf.if %95 {
      %c0_46 = arith.constant 0 : index
      %c0_47 = arith.constant 0 : index
      %96 = vector.load %arg5[%c0_46, %c0_47] : memref<3x128xf32, #tpu.memory_space<vmem>>, vector<3x128xf32>
      %cst_48 = arith.constant dense<0xFF800000> : vector<3xf32>
      %97 = vector.multi_reduction <maximumf>, %96, %cst_48 [1] : vector<3x128xf32> to vector<3xf32>
      %98 = vector.shape_cast %97 : vector<3xf32> to vector<3x1xf32>
      %c0_49 = arith.constant 0 : index
      %c0_50 = arith.constant 0 : index
      %99 = vector.load %arg5[%c0_49, %c0_50] : memref<3x128xf32, #tpu.memory_space<vmem>>, vector<3x128xf32>
      %100 = vector.broadcast %98 : vector<3x1xf32> to vector<3x128xf32>
      %101 = arith.cmpf oeq, %99, %100 : vector<3x128xf32>
      %c0_51 = arith.constant 0 : index
      %c0_52 = arith.constant 0 : index
      %102 = vector.load %arg6[%c0_51, %c0_52] : memref<3x128xf32, #tpu.memory_space<vmem>>, vector<3x128xf32>
      %cst_53 = arith.constant 1.024000e+03 : f32
      %103 = vector.broadcast %cst_53 : f32 to vector<3x128xf32>
      %104 = arith.select %101, %102, %103 : vector<3x128xi1>, vector<3x128xf32>
      %cst_54 = arith.constant dense<0x7F800000> : vector<3xf32>
      %105 = vector.multi_reduction <minimumf>, %104, %cst_54 [1] : vector<3x128xf32> to vector<3xf32>
      %106 = vector.shape_cast %105 : vector<3xf32> to vector<3x1xf32>
      %107 = vector.shape_cast %98 : vector<3x1xf32> to vector<3x1xf32>
      %108 = vector.broadcast %107 : vector<3x1xf32> to vector<3x128xf32>
      %c0_55 = arith.constant 0 : index
      %c0_56 = arith.constant 0 : index
      %c0_57 = arith.constant 0 : index
      %c0_58 = arith.constant 0 : index
      %109 = vector.load %arg4[%c0_55, %c0_56, %c0_57, %c0_58] : memref<1x2x3x128xf32, #tpu.memory_space<vmem>>, vector<1x1x3x128xf32>
      %110 = vector.shape_cast %109 : vector<1x1x3x128xf32> to vector<3x128xf32>
      %111 = vector.shape_cast %108 : vector<3x128xf32> to vector<1x1x3x128xf32>
      tpu.vector_store %arg4[%c0_55, %c0_56, %c0_57, %c0_58], %111 {strides = array<i32>} : memref<1x2x3x128xf32, #tpu.memory_space<vmem>>, vector<1x1x3x128xf32>,
      %112 = vector.shape_cast %106 : vector<3x1xf32> to vector<3x1xf32>
      %113 = vector.broadcast %112 : vector<3x1xf32> to vector<3x128xf32>
      %c0_59 = arith.constant 0 : index
      %c1_60 = arith.constant 1 : index
      %c0_61 = arith.constant 0 : index
      %c0_62 = arith.constant 0 : index
      %114 = vector.load %arg4[%c0_59, %c1_60, %c0_61, %c0_62] : memref<1x2x3x128xf32, #tpu.memory_space<vmem>>, vector<1x1x3x128xf32>
      %115 = vector.shape_cast %114 : vector<1x1x3x128xf32> to vector<3x128xf32>
      %116 = vector.shape_cast %113 : vector<3x128xf32> to vector<1x1x3x128xf32>
      tpu.vector_store %arg4[%c0_59, %c1_60, %c0_61, %c0_62], %116 {strides = array<i32>} : memref<1x2x3x128xf32, #tpu.memory_space<vmem>>, vector<1x1x3x128xf32>,
    } else {
    }
    return
  }
  func.func @transform_0(%arg0: i32, %arg1: i32) -> (i32, i32, i32) {
    %c0_i32 = arith.constant 0 : i32
    %c0_i32_0 = arith.constant 0 : i32
    %c0_i32_1 = arith.constant 0 : i32
    return %c0_i32, %arg1, %c0_i32_0 : i32, i32, i32
  }
  func.func @transform_1(%arg0: i32, %arg1: i32) -> (i32, i32, i32, i32) {
    %c0_i32 = arith.constant 0 : i32
    %c0_i32_0 = arith.constant 0 : i32
    %c0_i32_1 = arith.constant 0 : i32
    %c0_i32_2 = arith.constant 0 : i32
    return %arg0, %c0_i32, %c0_i32_0, %c0_i32_1 : i32, i32, i32, i32
  }
  func.func @transform_2(%arg0: i32, %arg1: i32) -> (i32, i32, i32, i32) {
    %c0_i32 = arith.constant 0 : i32
    %c0_i32_0 = arith.constant 0 : i32
    %c0_i32_1 = arith.constant 0 : i32
    %c0_i32_2 = arith.constant 0 : i32
    return %arg0, %c0_i32, %c0_i32_0, %c0_i32_1 : i32, i32, i32, i32
  }
}

</mosaic_0001>

<llo_original>
// kernel: tpu_custom_call.1
$region0: #{tpu_custom_call.1}
  #allocation0 [shape = 'u32[]', space=smem, size = 0x4, offset = 0x4, fixed_abs, tag = 'smem constant byte address 0x4 - core index']
  #allocation1 [shape = 'u32[72,128]{1,0:T(1,128)}', space=vmem, size = 0x9000, scoped, tag = 'internal scratch']
  #allocation2 [shape = 'f32[3,128]{1,0:T(4,128)}', space=vmem, size = 0x800, scoped, tag = 'scratch operand']
  #allocation3 [shape = 'f32[3,128]{1,0:T(4,128)}', space=vmem, size = 0x800, scoped, tag = 'scratch operand']
  %s0 = inlined_call_operand.hbm [shape: f32[9,8,128], index: 0, kind: input, shape index: {}]
  %s1 = inlined_call_operand.vmem [shape: f32[2,4,3,128], index: 1, kind: input, shape index: {}]
  %s2 = inlined_call_operand.vmem [shape: f32[2,2,3,128], index: 2, kind: output, shape index: {}]
  %s3 = sld [smem:[#allocation0]]
  $region53: #{tpu_custom_call.1} parent=0
    _
  %s5 = ssub.s32 1, %s3
  %s6 = scalar_select 0, %s5, %s3
  $region1: #{tpu_custom_call.1} parent=0
    #allocation4 [shape = 'u8[36864]{0}', space=vmem, size = 0x9000, scoped, tag = 'input window, operand 0, single buffered']
    #allocation5 [shape = 's32[2]{0}', space=sflag, size = 0x8, scoped, tag = 'scoped memory for tpu_custom_call.1']
    %7 = vsyncpa [#allocation5], 0
    loop: start=0, step=1, limit=4
    $region2: #{tpu_custom_call.1} parent=1 // loop_pre_header
      _
    $region3: #{tpu_custom_call.1} parent=1 // loop_header
      %s9 = sphi 0, %s13
      %p10 = scmp.ge.s32.totalorder %s9, 4
      %s16 = sphi 0, %s28
      %s17 = sphi 0, %s24
      %s18 = sphi 0, %s16
      %s19 = sphi 0, %s17
      %s20 = sphi 0, %s18
      %s21 = sphi 0, %s19
      %s31 = sphi 0, %s33
      %s34 = sphi 0, %s31
      %s35 = sphi 0, %s34
      %s51 = sphi 0, %s35
      %s57 = sphi 0, %s59
      %s60 = sphi 0, %s57
      %s61 = sphi 0, %s60
      %s77 = sphi 0, %s61
      %s83 = sphi 0, %s85
      %s86 = sphi 0, %s83
      %s87 = sphi 0, %s86
      %s103 = sphi 0, %s87
    $region4: #{tpu_custom_call.1} parent=1 // loop_header_branch
      %12 = sbr.rel (%p10) target = $region8
    $region5: #{tpu_custom_call.1} parent=1 // loop_body
      %s14 = ssub.s32 %s9, 1
      %s15 = ssub.s32 %s9, 2
      %s22 = sadd.s32 1, %s17
      %p23 = scmp.ge.s32.totalorder %s22, 1
      %s24 = scalar_select %p23, 0, %s22
      %s25 = sadd.s32 1, %s16
      %s26 = scalar_select %p23, %s25, %s16
      %p27 = scmp.ge.s32.totalorder %s26, 2
      %s28 = scalar_select %p27, 0, %s26
      %s29 = ssub.s32 %s17, %s24
      %p30 = scmp.eq.s32.totalorder %s29, 0
      %s32 = sadd.s32 %s31, 1
      %s33 = scalar_select %p30, %s31, %s32
      %p36 = pneg %p30
      %p37 = scmp.eq.s32.totalorder %s9, 1
      %p38 = por %p36, %p37
      %p39 = scmp.ne.s32.totalorder %s31, %s34
      %p40 = scmp.eq.s32.totalorder %s9, 0
      %p41 = por %p39, %p40
      %p42 = scmp.ne.s32.totalorder %s31, %s34
      %p43 = scmp.eq.s32.totalorder %s14, 1
      %p44 = por %p42, %p43
      %p45 = scmp.ne.s32.totalorder %s34, %s35
      %p46 = scmp.eq.s32.totalorder %s14, 0
      %p47 = por %p45, %p46
      %p48 = scmp.ne.s32.totalorder %s34, %s35
      %p49 = scmp.eq.s32.totalorder %s15, 1
      %p50 = por %p48, %p49
      %p52 = scmp.ne.s32.totalorder %s35, %s51
      %p53 = scmp.eq.s32.totalorder %s15, 0
      %p54 = por %p52, %p53
      %s55 = ssub.s32 %s16, %s28
      %p56 = scmp.eq.s32.totalorder %s55, 0
      %s58 = sadd.s32 %s57, 1
      %s59 = scalar_select %p56, %s57, %s58
      %p62 = pneg %p56
      %p63 = scmp.eq.s32.totalorder %s9, 1
      %p64 = por %p62, %p63
      %p65 = scmp.ne.s32.totalorder %s57, %s60
      %p66 = scmp.eq.s32.totalorder %s9, 0
      %p67 = por %p65, %p66
      %p68 = scmp.ne.s32.totalorder %s57, %s60
      %p69 = scmp.eq.s32.totalorder %s14, 1
      %p70 = por %p68, %p69
      %p71 = scmp.ne.s32.totalorder %s60, %s61
      %p72 = scmp.eq.s32.totalorder %s14, 0
      %p73 = por %p71, %p72
      %p74 = scmp.ne.s32.totalorder %s60, %s61
      %p75 = scmp.eq.s32.totalorder %s15, 1
      %p76 = por %p74, %p75
      %p78 = scmp.ne.s32.totalorder %s61, %s77
      %p79 = scmp.eq.s32.totalorder %s15, 0
      %p80 = por %p78, %p79
      %s81 = ssub.s32 %s16, %s28
      %p82 = scmp.eq.s32.totalorder %s81, 0
      %s84 = sadd.s32 %s83, 1
      %s85 = scalar_select %p82, %s83, %s84
      %p88 = pneg %p82
      %p89 = scmp.eq.s32.totalorder %s9, 1
      %p90 = por %p88, %p89
      %p91 = scmp.ne.s32.totalorder %s83, %s86
      %p92 = scmp.eq.s32.totalorder %s9, 0
      %p93 = por %p91, %p92
      %p94 = scmp.ne.s32.totalorder %s83, %s86
      %p95 = scmp.eq.s32.totalorder %s14, 1
      %p96 = por %p94, %p95
      %p97 = scmp.ne.s32.totalorder %s86, %s87
      %p98 = scmp.eq.s32.totalorder %s14, 0
      %p99 = por %p97, %p98
      %p100 = scmp.ne.s32.totalorder %s86, %s87
      %p101 = scmp.eq.s32.totalorder %s15, 1
      %p102 = por %p100, %p101
      %p104 = scmp.ne.s32.totalorder %s87, %s103
      %p105 = scmp.eq.s32.totalorder %s15, 0
      %p106 = por %p104, %p105
      %p107 = scmp.le.s32.totalorder 1, %s9
      %p108 = scmp.lt.s32.totalorder %s9, 3
      %p109 = pnand %p107, %p108
      %p110 = pneg %p109
      // Predicated region
      $region9: #{tpu_custom_call.1} parent=5 // pred_check
        _
      $region10: #{tpu_custom_call.1} parent=5 // pred_check_branch
        %112 = sbr.rel (%p109) target = $region12
      $region11: #{tpu_custom_call.1} parent=5 // pred_region
        %s113 = ssub.s32 %s9, 1
        // Predicated region
        $region13: #{tpu_custom_call.1} parent=11 // pred_check
          %p114 = pneg %p47
        $region14: #{tpu_custom_call.1} parent=11 // pred_check_branch
          %116 = sbr.rel (%p114) target = $region16
        $region15: #{tpu_custom_call.1} parent=11 // pred_region
          %118 = vsyncadd [#allocation5], 0
          %s119 = smul.addr %s19, 8
          %s120 = scalar_lea.hbm %s0, %s119
          %s121 = sshll.u32 %s120, 4
          %s122 = int_to_ptr.hbm [resolvable:$true] %s121
          %s123 = sshll.u32 [#allocation4], 4
          %s124 = int_to_ptr.vmem [resolvable:$true] %s123
          %129 = dma.hbm_to_vmem [thread:$0]  %s122, 1152, %s124, [#allocation5], 128, 128, 8
        $region16: #{tpu_custom_call.1} parent=11 // pred_fallthru
          _
      $region12: #{tpu_custom_call.1} parent=5 // pred_fallthru
        _
      %p130 = scmp.lt.s32.totalorder %s9, 2
      // Predicated region
      $region17: #{tpu_custom_call.1} parent=5 // pred_check
        %p131 = pneg %p130
      $region18: #{tpu_custom_call.1} parent=5 // pred_check_branch
        %133 = sbr.rel (%p131) target = $region20
      $region19: #{tpu_custom_call.1} parent=5 // pred_region
        // Predicated region
        $region21: #{tpu_custom_call.1} parent=19 // pred_check
          %p134 = pneg %p67
        $region22: #{tpu_custom_call.1} parent=19 // pred_check_branch
          %136 = sbr.rel (%p134) target = $region24
        $region23: #{tpu_custom_call.1} parent=19 // pred_region
          %p137 = scmp.lt.s32.totalorder %s16, 1
          %s138 = scalar_select %p137, %s16, 1
          %s139 = smul.addr %s138, 4
          %s140 = smul.addr %s139, 4
          %s141 = scalar_lea.vmem %s1, %s140
        $region24: #{tpu_custom_call.1} parent=19 // pred_fallthru
          _
      $region20: #{tpu_custom_call.1} parent=5 // pred_fallthru
        _
      %p142 = scmp.le.s32.totalorder 1, %s9
      %p143 = scmp.lt.s32.totalorder %s9, 3
      %p144 = pnand %p142, %p143
      %p145 = pneg %p144
      // Predicated region
      $region25: #{tpu_custom_call.1} parent=5 // pred_check
        _
      $region26: #{tpu_custom_call.1} parent=5 // pred_check_branch
        %147 = sbr.rel (%p144) target = $region28
      $region27: #{tpu_custom_call.1} parent=5 // pred_region
        %s148 = ssub.s32 %s9, 1
        // Predicated region
        $region29: #{tpu_custom_call.1} parent=27 // pred_check
          %p149 = pneg %p47
        $region30: #{tpu_custom_call.1} parent=27 // pred_check_branch
          %151 = sbr.rel (%p149) target = $region32
        $region31: #{tpu_custom_call.1} parent=27 // pred_region
          %153 = dma.done [#allocation5], 1152
        $region32: #{tpu_custom_call.1} parent=27 // pred_fallthru
          _
        %p154 = pneg %p47
        %p155 = pneg %p44
        %p156 = scmp.lt.s32.totalorder %s18, 1
        %s157 = scalar_select %p156, %s18, 1
        %s158 = smul.addr %s157, 4
        %s159 = smul.addr %s158, 4
        %s160 = scalar_lea.vmem %s1, %s159
        %p161 = pneg %p73
        %p162 = pneg %p70
        %p163 = pneg %p99
        %p164 = pneg %p96
        %p165 = scmp.lt.s32.totalorder %s18, 1
        %s166 = scalar_select %p165, %s18, 1
        %s167 = smul.addr %s166, 2
        %s168 = smul.addr %s167, 4
        %s169 = scalar_lea.vmem %s2, %s168
        %p170 = scmp.lt.s32.totalorder %s18, 1
        %s171 = scalar_select %p170, %s18, 1
        %s172 = smul.addr %s171, 4
        %s173 = smul.addr %s172, 4
        %s174 = scalar_lea.vmem %s1, %s173
        %p175 = scmp.lt.s32.totalorder %s18, 1
        %s176 = scalar_select %p175, %s18, 1
        %s177 = smul.addr %s176, 2
        %s178 = smul.addr %s177, 4
        %s179 = scalar_lea.vmem %s2, %s178
        %v180 = vld [vmem:[#allocation4] sm:$0xff]
        %s181 = scalar_lea.vmem [#allocation4], 8
        %v182 = vld [vmem:[%s181] sm:$0xff]
        %s183 = scalar_lea.vmem [#allocation4], 16
        %v184 = vld [vmem:[%s183] sm:$0xff]
        %s185 = scalar_lea.vmem [#allocation4], 24
        %v186 = vld [vmem:[%s185] sm:$0xff]
        %s187 = scalar_lea.vmem [#allocation4], 64
        %v188 = vld [vmem:[%s187] sm:$0xff]
        %v189 = vld [vmem:[%s174] sm:$0x7]
        %v191 = vrot.slane %v189, 1
        %v192 = vrot.slane %v189, 2
        %s195 = scalar_lea.vmem %s174, 4
        %v196 = vld [vmem:[%s195] sm:$0x7]
        %v198 = vrot.slane %v196, 1
        %v199 = vrot.slane %v196, 2
        %s202 = scalar_lea.vmem %s174, 8
        %v203 = vld [vmem:[%s202] sm:$0x7]
        %v205 = vrot.slane %v203, 1
        %v206 = vrot.slane %v203, 2
        %s209 = scalar_lea.vmem %s174, 12
        %v210 = vld [vmem:[%s209] sm:$0x7]
        %v212 = vrot.slane %v210, 1
        %v213 = vrot.slane %v210, 2
        %v216 = vperm.slane %v203, 0
        %v217 = vperm.slane %v205, 0
        %v218 = vperm.slane %v206, 0
        %v222 = vmin.f32 %v216, %v184
        %v223 = vmin.f32 %v217, %v184
        %v224 = vmin.f32 %v218, %v184
        %v225 = vperm.slane %v189, 0
        %v226 = vperm.slane %v191, 0
        %v227 = vperm.slane %v192, 0
        %v231 = vmax.f32 %v225, %v180
        %v232 = vmax.f32 %v226, %v180
        %v233 = vmax.f32 %v227, %v180
        %v234 = vsub.f32 %v222, %v231
        %v235 = vsub.f32 %v223, %v232
        %v236 = vsub.f32 %v224, %v233
        %v237 = vmax.f32 %v234, 0.0
        %v238 = vmax.f32 %v235, 0.0
        %v239 = vmax.f32 %v236, 0.0
        %v240 = vperm.slane %v210, 0
        %v241 = vperm.slane %v212, 0
        %v242 = vperm.slane %v213, 0
        %v246 = vmin.f32 %v240, %v186
        %v247 = vmin.f32 %v241, %v186
        %v248 = vmin.f32 %v242, %v186
        %v249 = vperm.slane %v196, 0
        %v250 = vperm.slane %v198, 0
        %v251 = vperm.slane %v199, 0
        %v255 = vmax.f32 %v249, %v182
        %v256 = vmax.f32 %v250, %v182
        %v257 = vmax.f32 %v251, %v182
        %v258 = vsub.f32 %v246, %v255
        %v259 = vsub.f32 %v247, %v256
        %v260 = vsub.f32 %v248, %v257
        %v261 = vmax.f32 %v258, 0.0
        %v262 = vmax.f32 %v259, 0.0
        %v263 = vmax.f32 %v260, 0.0
        %v264 = vmul.f32 %v237, %v261
        %v265 = vmul.f32 %v238, %v262
        %v266 = vmul.f32 %v239, %v263
        %v267 = vsub.f32 %v203, %v189
        %v268 = vsub.f32 %v205, %v191
        %v269 = vsub.f32 %v206, %v192
        %v270 = vsub.f32 %v210, %v196
        %v271 = vsub.f32 %v212, %v198
        %v272 = vsub.f32 %v213, %v199
        %v273 = vmul.f32 %v267, %v270
        %v274 = vmul.f32 %v268, %v271
        %v275 = vmul.f32 %v269, %v272
        %v279 = vperm.slane %v273, 0
        %v280 = vperm.slane %v274, 0
        %v281 = vperm.slane %v275, 0
        %v285 = vadd.f32 %v279, %v188
        %v286 = vadd.f32 %v280, %v188
        %v287 = vadd.f32 %v281, %v188
        %v288 = vsub.f32 %v285, %v264
        %v289 = vsub.f32 %v286, %v265
        %v290 = vsub.f32 %v287, %v266
        %vm291 = vcmp.gt.f32.partialorder %v288, 0.0
        %vm292 = vcmp.gt.f32.partialorder %v289, 0.0
        %vm293 = vcmp.gt.f32.partialorder %v290, 0.0
        %v294 = vsel %vm291, %v288, 1.0
        %v295 = vsel %vm292, %v289, 1.0
        %v296 = vsel %vm293, %v290, 1.0
        %v297 = vrcp.pop %v294
        %v298 = vrcp.pop %v295
        %v299 = vrcp.pop %v296
        %v300 = vmul.f32 %v294, %v297
        %v301 = vmul.f32 %v295, %v298
        %v302 = vmul.f32 %v296, %v299
        %v303 = vsub.f32 2.0, %v300
        %v304 = vsub.f32 2.0, %v301
        %v305 = vsub.f32 2.0, %v302
        %v306 = vmul.f32 %v297, %v303
        %v307 = vmul.f32 %v298, %v304
        %v308 = vmul.f32 %v299, %v305
        %v309 = vmul.f32 %v264, %v306
        %v310 = vmul.f32 %v265, %v307
        %v311 = vmul.f32 %v266, %v308
        %v312 = vlaneseq
        %v313 = vshrl.u32 %v312, 7
        %v314 = vlaneseq
        %v315 = vand.u32 %v314, 127
        %s316 = smul.u32 %s19, 1024
        %v317 = vmul.u32 %v313, 128
        %v318 = vstv %s316
        %v319 = vadd.s32 %v318, %v317
        %v320 = vadd.s32 %v319, %v315
        %v321 = vcvt.s32.f32 %v320
        %v322 = vrot.slane %v309, 4
        %v323 = vmax.f32 %v309, %v322
        %v324 = vrot.slane %v323, 2
        %v325 = vmax.f32 %v323, %v324
        %v326 = vrot.slane %v325, 1
        %v327 = vmax.f32 %v325, %v326
        %v328 = vrot.slane %v310, 4
        %v329 = vmax.f32 %v310, %v328
        %v330 = vrot.slane %v329, 2
        %v331 = vmax.f32 %v329, %v330
        %v332 = vrot.slane %v331, 1
        %v333 = vmax.f32 %v331, %v332
        %v334 = vrot.slane %v311, 4
        %v335 = vmax.f32 %v311, %v334
        %v336 = vrot.slane %v335, 2
        %v337 = vmax.f32 %v335, %v336
        %v338 = vrot.slane %v337, 1
        %v339 = vmax.f32 %v337, %v338
        %vm340 = vcmp.eq.f32.partialorder %v309, %v327
        %vm341 = vcmp.eq.f32.partialorder %v310, %v333
        %vm342 = vcmp.eq.f32.partialorder %v311, %v339
        %v343 = vsel %vm340, %v321, 1024.0
        %v344 = vsel %vm341, %v321, 1024.0
        %v345 = vsel %vm342, %v321, 1024.0
        %v346 = vrot.slane %v343, 4
        %v347 = vmin.f32 %v343, %v346
        %v348 = vrot.slane %v347, 2
        %v349 = vmin.f32 %v347, %v348
        %v350 = vrot.slane %v349, 1
        %v351 = vmin.f32 %v349, %v350
        %v352 = vrot.slane %v344, 4
        %v353 = vmin.f32 %v344, %v352
        %v354 = vrot.slane %v353, 2
        %v355 = vmin.f32 %v353, %v354
        %v356 = vrot.slane %v355, 1
        %v357 = vmin.f32 %v355, %v356
        %v358 = vrot.slane %v345, 4
        %v359 = vmin.f32 %v345, %v358
        %v360 = vrot.slane %v359, 2
        %v361 = vmin.f32 %v359, %v360
        %v362 = vrot.slane %v361, 1
        %v363 = vmin.f32 %v361, %v362
        %p364 = scmp.eq.s32.totalorder %s19, 0
        // Predicated region
        $region33: #{tpu_custom_call.1} parent=27 // pred_check
          %p365 = pneg %p364
        $region34: #{tpu_custom_call.1} parent=27 // pred_check_branch
          %367 = sbr.rel (%p365) target = $region36
        $region35: #{tpu_custom_call.1} parent=27 // pred_region
          %368 = vst [vmem:[#allocation2] sm:$0x7] -1.0
          %369 = vst [vmem:[#allocation3] sm:$0x7] 1024.0
        $region36: #{tpu_custom_call.1} parent=27 // pred_fallthru
          _
        %v370 = vld [vmem:[#allocation2] sm:$0x7]
        %v372 = vrot.slane %v370, 1
        %v373 = vrot.slane %v370, 2
        %vm377 = vcmp.gt.f32.partialorder %v327, %v370
        %vm378 = vcmp.gt.f32.partialorder %v333, %v372
        %vm379 = vcmp.gt.f32.partialorder %v339, %v373
        %v380 = vld [vmem:[#allocation3] sm:$0x7]
        %v382 = vrot.slane %v380, 1
        %v383 = vrot.slane %v380, 2
        %v387 = vsel %vm377, %v351, %v380
        %v388 = vsel %vm378, %v357, %v382
        %v389 = vsel %vm379, %v363, %v383
        %v393 = vrot.slane %v388, 7
        %vm394 = vcmask 1041409
        %v395 = vsel %vm394, %v393, %v387
        %v396 = vrot.slane %v389, 6
        %vm397 = vcmask 1042434
        %v398 = vsel %vm397, %v396, %v395
        %400 = vst [vmem:[#allocation3] sm:$0x7] %v398
        %v401 = vld [vmem:[#allocation2] sm:$0x7]
        %v405 = vsel %vm394, %v333, %v327
        %v406 = vsel %vm397, %v339, %v405
        %v408 = vmax.f32 %v401, %v406
        %409 = vst [vmem:[#allocation2] sm:$0x7] %v408
        // Predicated region
        $region37: #{tpu_custom_call.1} parent=27 // pred_check
          %p410 = pneg %p364
        $region38: #{tpu_custom_call.1} parent=27 // pred_check_branch
          %412 = sbr.rel (%p410) target = $region40
        $region39: #{tpu_custom_call.1} parent=27 // pred_region
          %v413 = vld [vmem:[#allocation2] sm:$0x7]
          %vm414 = vcmask 1042432
          %v415 = vsel %vm414, %v413, -inf
          %416 = vmax.xlane.f32.xlu0 %v415
          %v417 = vpop.xlane.xlu0 %416
          %vm418 = vcmp.eq.f32.partialorder %v413, %v417
          %v419 = vld [vmem:[#allocation3] sm:$0x7]
          %v420 = vsel %vm418, %v419, 1024.0
          %v421 = vsel %vm414, %v420, inf
          %422 = vmin.xlane.f32.xlu0 %v421
          %v423 = vpop.xlane.xlu0 %422
          %424 = vst [vmem:[%s179] sm:$0x7] %v417
          %s425 = scalar_lea.vmem %s179, 4
          %426 = vst [vmem:[%s425] sm:$0x7] %v423
        $region40: #{tpu_custom_call.1} parent=27 // pred_fallthru
          _
        %p427 = scmp.lt.s32.totalorder %s18, 1
        %s428 = scalar_select %p427, %s18, 1
        %s429 = smul.addr %s428, 2
        %s430 = smul.addr %s429, 4
        %s431 = scalar_lea.vmem %s2, %s430
        // Predicated region
        $region41: #{tpu_custom_call.1} parent=27 // pred_check
          %p432 = pneg %p96
        $region42: #{tpu_custom_call.1} parent=27 // pred_check_branch
          %434 = sbr.rel (%p432) target = $region44
        $region43: #{tpu_custom_call.1} parent=27 // pred_region
          _
        $region44: #{tpu_custom_call.1} parent=27 // pred_fallthru
          _
      $region28: #{tpu_custom_call.1} parent=5 // pred_fallthru
        _
      %p435 = scmp.le.s32.totalorder 2, %s9
      // Predicated region
      $region45: #{tpu_custom_call.1} parent=5 // pred_check
        %p436 = pneg %p435
      $region46: #{tpu_custom_call.1} parent=5 // pred_check_branch
        %438 = sbr.rel (%p436) target = $region48
      $region47: #{tpu_custom_call.1} parent=5 // pred_region
        %s439 = ssub.s32 %s9, 2
        // Predicated region
        $region49: #{tpu_custom_call.1} parent=47 // pred_check
          %p440 = pneg %p102
        $region50: #{tpu_custom_call.1} parent=47 // pred_check_branch
          %442 = sbr.rel (%p440) target = $region52
        $region51: #{tpu_custom_call.1} parent=47 // pred_region
          %p443 = scmp.lt.s32.totalorder %s20, 1
          %s444 = scalar_select %p443, %s20, 1
          %s445 = smul.addr %s444, 2
          %s446 = smul.addr %s445, 4
          %s447 = scalar_lea.vmem %s2, %s446
        $region52: #{tpu_custom_call.1} parent=47 // pred_fallthru
          _
      $region48: #{tpu_custom_call.1} parent=5 // pred_fallthru
        _
    $region6: #{tpu_custom_call.1} parent=1 // loop_footer
      %s13 = sadd.s32 1, %s9
    $region7: #{tpu_custom_call.1} parent=1 // loop_footer_branch
      %8 = sbr.rel target = $region3
    $region8: #{tpu_custom_call.1} parent=1 // loop_exit
      _
    %448 = vsyncpa [#allocation5], 1
    %s449 = scalar_lea.sflag [#allocation5], 1
    %450 = vsyncpa %s449, 1

</llo_original>
